<compile_context>
chip_gen: v6e
topology: v6e:2x2x1
jax: 0.10.0
libtpu: 0.0.40
codegen_flags: <defaults>
</compile_context>

<pallas_src>
import functools

import jax
import jax.numpy as jnp
from jax.experimental import pallas as pl
from jax.experimental.pallas import tpu as pltpu

_LANE = 128
_VMEM_BUDGET_PER_BUF = 12 << 20   # ~12 MiB per pipeline buffer (safe on v5e/v6e/v7x)
_MIN_STEP_BYTES = 1 << 20         # only force extra grid steps if each stays >= 1 MiB
_MIN_STEPS = 4                    # target >= 4 steps: pipelining + megacore sharding
_PALLAS_MIN_BYTES = 128 << 10     # below this, XLA's fused reduce beats launch overhead


def _sublane_pack(dtype):
    # Sublane packing factor: 8 for f32, 16 for bf16/f16, 32 for int8/fp8.
    return max(8, 32 // jnp.dtype(dtype).itemsize)


def _pick_row_tile(total_rows, row_vmem_bytes, pack):
    """Rows per grid step: bytes-based (not row-capped); prefer >= _MIN_STEPS grid
    steps when each step remains multi-MiB; round to the sublane packing factor."""
    tile = max(1, _VMEM_BUDGET_PER_BUF // row_vmem_bytes)
    tile = min(tile, total_rows)
    cap = -(-total_rows // _MIN_STEPS)          # ceil(total_rows / _MIN_STEPS)
    if cap * row_vmem_bytes >= _MIN_STEP_BYTES:
        tile = min(tile, cap)
    if tile >= total_rows:
        return total_rows                       # full dim: (8,128) rule satisfied
    if tile >= pack:
        return (tile // pack) * pack
    return min(pack, total_rows)


def _gap_kernel_lane_dense(x_ref, o_ref, *, inv_hw):
    # x_ref: (TR, 128, HW) tile; o_ref: (TR, 128) lane-dense tile.
    # Strictly per-row reduction: padded tail rows of a partial block only feed
    # their own (discarded) outputs, so no tail masking is required.
    s = jnp.sum(x_ref[...], axis=-1, dtype=jnp.float32)
    o_ref[...] = (s * jnp.float32(inv_hw)).astype(o_ref.dtype)


def _gap_kernel_rows(x_ref, o_ref, *, inv_hw):
    # Fallback: x_ref (TM, HW) tile; o_ref (TM, 1) tile.
    s = jnp.sum(x_ref[...], axis=-1, dtype=jnp.float32, keepdims=True)
    o_ref[...] = (s * jnp.float32(inv_hw)).astype(o_ref.dtype)


def _compiler_params(in_tile_bytes, out_tile_bytes):
    needed = 2 * (in_tile_bytes + out_tile_bytes) + (4 << 20)  # double-buffered + slack
    return pltpu.CompilerParams(
        dimension_semantics=("parallel",),
        vmem_limit_bytes=int(max(needed, 16 << 20)),
    )


def _gap_lane_dense(x, n, c, hw, inv_hw):
    """Main path: N*C % 128 == 0. Input viewed as (R, 128, HW); lane-dense output."""
    nc = n * c
    r = nc // _LANE
    x3 = x.reshape(r, _LANE, hw)

    itemsize = jnp.dtype(x.dtype).itemsize
    hw_pad = -(-hw // _LANE) * _LANE
    row_bytes = _LANE * hw_pad * itemsize          # padded VMEM bytes per leading row
    pack = _sublane_pack(x.dtype)
    tr = _pick_row_tile(r, row_bytes, pack)
    grid = (pl.cdiv(r, tr),)

    in_tile_bytes = tr * row_bytes
    out_tile_bytes = tr * _LANE * itemsize

    out = pl.pallas_call(
        functools.partial(_gap_kernel_lane_dense, inv_hw=inv_hw),
        out_shape=jax.ShapeDtypeStruct((r, _LANE), x.dtype),
        grid=grid,
        in_specs=[pl.BlockSpec((tr, _LANE, hw), lambda i: (i, 0, 0))],
        out_specs=pl.BlockSpec((tr, _LANE), lambda i: (i, 0)),
        compiler_params=_compiler_params(in_tile_bytes, out_tile_bytes),
        cost_estimate=pl.CostEstimate(
            flops=nc * hw,
            transcendentals=0,
            bytes_accessed=nc * hw * itemsize + nc * itemsize,
        ),
    )(x3)
    return out.reshape(n, c)


def _gap_rows(x, n, c, hw, inv_hw):
    """Fallback path: (N*C, HW) rows reduced to (TM, 1) blocks."""
    nc = n * c
    x2 = x.reshape(nc, hw)

    itemsize = jnp.dtype(x.dtype).itemsize
    hw_pad = -(-hw // _LANE) * _LANE
    row_bytes = hw_pad * itemsize
    pack = _sublane_pack(x.dtype)
    tm = _pick_row_tile(nc, row_bytes, pack)
    grid = (pl.cdiv(nc, tm),)

    in_tile_bytes = tm * row_bytes
    out_tile_bytes = tm * _LANE * itemsize         # (TM, 1) lane-pads to 128 in VMEM

    out = pl.pallas_call(
        functools.partial(_gap_kernel_rows, inv_hw=inv_hw),
        out_shape=jax.ShapeDtypeStruct((nc, 1), x.dtype),
        grid=grid,
        in_specs=[pl.BlockSpec((tm, hw), lambda i: (i, 0))],
        out_specs=pl.BlockSpec((tm, 1), lambda i: (i, 0)),
        compiler_params=_compiler_params(in_tile_bytes, out_tile_bytes),
        cost_estimate=pl.CostEstimate(
            flops=nc * hw,
            transcendentals=0,
            bytes_accessed=nc * hw * itemsize + nc * itemsize,
        ),
    )(x2)
    return out.reshape(n, c)


def _gap_single(x):
    """Global average pool one (N, C, *spatial) tensor -> (N, C)."""
    if x.ndim < 3:
        raise ValueError("expected an input of rank >= 3 (N, C, *spatial)")
    n, c = int(x.shape[0]), int(x.shape[1])
    hw = 1
    for d in x.shape[2:]:
        hw *= int(d)
    nc = n * c
    inv_hw = 1.0 / hw
    itemsize = jnp.dtype(x.dtype).itemsize

    # Tiny feature maps: fixed kernel launch/pipeline cost exceeds the data
    # movement; XLA's fused reduce is as fast or faster.
    if nc * hw * itemsize < _PALLAS_MIN_BYTES:
        m = jnp.mean(x.reshape(n, c, hw).astype(jnp.float32), axis=-1)
        return m.astype(x.dtype)

    pack = _sublane_pack(x.dtype)
    hw_pad = -(-hw // _LANE) * _LANE
    lane_row_bytes = _LANE * hw_pad * itemsize
    if nc % _LANE == 0 and pack * lane_row_bytes <= _VMEM_BUDGET_PER_BUF:
        return _gap_lane_dense(x, n, c, hw, inv_hw)
    return _gap_rows(x, n, c, hw, inv_hw)


def global_average_pooling_conv2d(inputs):
    """Forward pass of GlobalAveragePoolingConv2d.

    Accepts a single NCHW array or a tuple of NCHW arrays; always returns a
    tuple (matching the PyTorch module, which wraps a single-tensor result in a
    tuple)."""
    if isinstance(inputs, tuple):
        return tuple(_gap_single(x) for x in inputs)
    elif hasattr(inputs, "shape"):
        return (_gap_single(inputs),)
    else:
        raise TypeError("neck inputs should be tuple or jax array")


if __name__ == "__main__":
    key = jax.random.PRNGKey(0)
    ks = jax.random.split(key, 6)

    def ref_gap(x):
        n, c = x.shape[0], x.shape[1]
        m = jnp.mean(x.reshape(n, c, -1).astype(jnp.float32), axis=-1)
        return m.astype(x.dtype)

    # 1) Tiny module-default sized input -> XLA fallback path.
    x_tiny = jax.random.normal(ks[0], (2, 4, 16, 16), dtype=jnp.float32)
    (o_tiny,) = global_average_pooling_conv2d(x_tiny)
    jax.block_until_ready(o_tiny)
    assert o_tiny.shape == (2, 4)
    assert jnp.allclose(o_tiny, ref_gap(x_tiny), atol=1e-5, rtol=1e-5)

    # 2) Lane-dense Pallas path (N*C % 128 == 0), single grid step.
    x_ld = jax.random.normal(ks[1], (2, 128, 16, 16), dtype=jnp.float32)
    (o_ld,) = global_average_pooling_conv2d(x_ld)
    jax.block_until_ready(o_ld)
    assert jnp.allclose(o_ld, ref_gap(x_ld), atol=1e-5, rtol=1e-5)

    # 3) Lane-dense Pallas path with small 7x7 spatial (typical backbone neck).
    x_7 = jax.random.normal(ks[2], (2, 2048, 7, 7), dtype=jnp.float32)
    (o_7,) = global_average_pooling_conv2d(x_7)
    jax.block_until_ready(o_7)
    assert jnp.allclose(o_7, ref_gap(x_7), atol=1e-5, rtol=1e-5)

    # 4) Lane-dense Pallas path with a multi-step (pipelined, megacore-shardable) grid.
    x_big = jax.random.normal(ks[3], (8, 1024, 14, 14), dtype=jnp.float32)
    (o_big,) = global_average_pooling_conv2d(x_big)
    jax.block_until_ready(o_big)
    assert jnp.allclose(o_big, ref_gap(x_big), atol=1e-5, rtol=1e-5)

    # 5) Row-fallback Pallas path (N*C not a multiple of 128).
    x_rows = jax.random.normal(ks[4], (2, 24, 32, 32), dtype=jnp.float32)
    (o_rows,) = global_average_pooling_conv2d(x_rows)
    jax.block_until_ready(o_rows)
    assert jnp.allclose(o_rows, ref_gap(x_rows), atol=1e-5, rtol=1e-5)

    # 6) Tuple (multi-scale) input, including bf16 (exercises 16-row packing).
    xs = (x_ld, jax.random.normal(ks[5], (2, 128, 16, 16), dtype=jnp.bfloat16))
    outs = global_average_pooling_conv2d(xs)
    jax.block_until_ready(outs)
    assert jnp.allclose(outs[0], ref_gap(xs[0]), atol=1e-5, rtol=1e-5)
    assert jnp.allclose(outs[1].astype(jnp.float32),
                        ref_gap(xs[1]).astype(jnp.float32),
                        atol=2e-2, rtol=2e-2)

    print("KERNEL_OK")
</pallas_src>

<mosaic_0001>
module attributes {stable_mosaic.version = 11 : i64} {
  func.func @_gap_kernel_lane_dense(%arg0: i32, %arg1: memref<2x128x256xf32, #tpu.memory_space<vmem>>, %arg2: memref<2x128xf32, #tpu.memory_space<vmem>>) attributes {dimension_semantics = [#tpu.dimension_semantics<parallel>], iteration_bounds = array<i64: 1>, scalar_prefetch = 0 : i64, scratch_operands = 0 : i64, tpu.core_type = #tpu.core_type<tc>, window_params = [{transform_indices = @transform_0, window_bounds = array<i64: 2, 128, 256>}, {transform_indices = @transform_1, window_bounds = array<i64: 2, 128>}]} {
    %c0 = arith.constant 0 : index
    %c0_0 = arith.constant 0 : index
    %c0_1 = arith.constant 0 : index
    %0 = vector.load %arg1[%c0, %c0_0, %c0_1] : memref<2x128x256xf32, #tpu.memory_space<vmem>>, vector<2x128x256xf32>
    %cst = arith.constant dense<0.000000e+00> : vector<2x128xf32>
    %1 = vector.multi_reduction <add>, %0, %cst [2] : vector<2x128x256xf32> to vector<2x128xf32>
    %cst_2 = arith.constant 3.906250e-03 : f32
    %2 = vector.broadcast %cst_2 : f32 to vector<2x128xf32>
    %3 = arith.mulf %1, %2 : vector<2x128xf32>
    %c0_3 = arith.constant 0 : index
    %c0_4 = arith.constant 0 : index
    %4 = vector.load %arg2[%c0_3, %c0_4] : memref<2x128xf32, #tpu.memory_space<vmem>>, vector<2x128xf32>
    tpu.vector_store %arg2[%c0_3, %c0_4], %3 {strides = array<i32>} : memref<2x128xf32, #tpu.memory_space<vmem>>, vector<2x128xf32>,
    return
  }
  func.func @transform_0(%arg0: i32) -> (i32, i32, i32) {
    %c0_i32 = arith.constant 0 : i32
    %c0_i32_0 = arith.constant 0 : i32
    %c0_i32_1 = arith.constant 0 : i32
    return %arg0, %c0_i32, %c0_i32_0 : i32, i32, i32
  }
  func.func @transform_1(%arg0: i32) -> (i32, i32) {
    %c0_i32 = arith.constant 0 : i32
    %c0_i32_0 = arith.constant 0 : i32
    return %arg0, %c0_i32 : i32, i32
  }
}

</mosaic_0001>

<llo_original>
// kernel: tpu_custom_call.1
$region0: #{tpu_custom_call.1}
  #allocation0 [shape = 'u32[]', space=smem, size = 0x4, offset = 0x4, fixed_abs, tag = 'smem constant byte address 0x4 - core index']
  #allocation1 [shape = 'u32[144,128]{1,0:T(1,128)}', space=vmem, size = 0x12000, scoped, tag = 'internal scratch']
  %s0 = inlined_call_operand.hbm [shape: f32[2,128,256], index: 0, kind: input, shape index: {}]
  %s1 = inlined_call_operand.hbm [shape: f32[2,128], index: 1, kind: output, shape index: {}]
  %s2 = sld [smem:[#allocation0]]
  $region18: #{tpu_custom_call.1} parent=0
    _
  %s4 = ssub.s32 1, %s2
  %s5 = scalar_select 0, %s4, %s2
  $region1: #{tpu_custom_call.1} parent=0
    #allocation2 [shape = 'u8[262144]{0}', space=vmem, size = 0x40000, scoped, tag = 'input window, operand 0, single buffered']
    #allocation3 [shape = 's32[1]{0}', space=sflag, size = 0x4, scoped, tag = 'scoped memory for tpu_custom_call.1']
    #allocation4 [shape = 's32[1]{0}', space=sflag, size = 0x4, scoped, tag = 'scoped memory for tpu_custom_call.1']
    #allocation5 [shape = 'u8[1024]{0}', space=vmem, size = 0x400, scoped, tag = 'output window, operand 0, single buffered']
    %6 = vsyncpa [#allocation3], 0
    %7 = vsyncpa [#allocation4], 0
    // Predicated region
    $region2: #{tpu_custom_call.1} parent=1 // pred_check
      _
    $region3: #{tpu_custom_call.1} parent=1 // pred_check_branch
      %9 = sbr.rel (0) target = $region5
    $region4: #{tpu_custom_call.1} parent=1 // pred_region
      %s11 = ssub.s32 8192, 8192
      %12 = vsyncadd [#allocation3], %s11
      %s13 = sshll.u32 [#allocation2], 4
      %s14 = int_to_ptr.vmem [resolvable:$true] %s13
      %19 = dma.hbm_to_vmem [thread:$0]  %s0, 8192, %s14, [#allocation3], 256, 256, 16
    $region5: #{tpu_custom_call.1} parent=1 // pred_fallthru
      _
    // Predicated region
    $region6: #{tpu_custom_call.1} parent=1 // pred_check
      _
    $region7: #{tpu_custom_call.1} parent=1 // pred_check_branch
      %21 = sbr.rel (0) target = $region9
    $region8: #{tpu_custom_call.1} parent=1 // pred_region
      %22 = dma.done [#allocation3], 8192
    $region9: #{tpu_custom_call.1} parent=1 // pred_fallthru
      _
    %v23 = vld [vmem:[#allocation2] sm:$0xff]
    %v24 = vld [vmem:[#allocation2 + $0x8] sm:$0xff]
    %v25 = vld [vmem:[#allocation2 + $0x10] sm:$0xff]
    %v26 = vld [vmem:[#allocation2 + $0x18] sm:$0xff]
    %v27 = vld [vmem:[#allocation2 + $0x20] sm:$0xff]
    %v28 = vld [vmem:[#allocation2 + $0x28] sm:$0xff]
    %v29 = vld [vmem:[#allocation2 + $0x30] sm:$0xff]
    %v30 = vld [vmem:[#allocation2 + $0x38] sm:$0xff]
    %v31 = vld [vmem:[#allocation2 + $0x40] sm:$0xff]
    %v32 = vld [vmem:[#allocation2 + $0x48] sm:$0xff]
    %v33 = vld [vmem:[#allocation2 + $0x50] sm:$0xff]
    %v34 = vld [vmem:[#allocation2 + $0x58] sm:$0xff]
    %v35 = vld [vmem:[#allocation2 + $0x60] sm:$0xff]
    %v36 = vld [vmem:[#allocation2 + $0x68] sm:$0xff]
    %v37 = vld [vmem:[#allocation2 + $0x70] sm:$0xff]
    %v38 = vld [vmem:[#allocation2 + $0x78] sm:$0xff]
    %v39 = vld [vmem:[#allocation2 + $0x80] sm:$0xff]
    %v40 = vld [vmem:[#allocation2 + $0x88] sm:$0xff]
    %v41 = vld [vmem:[#allocation2 + $0x90] sm:$0xff]
    %v42 = vld [vmem:[#allocation2 + $0x98] sm:$0xff]
    %v43 = vld [vmem:[#allocation2 + $0xa0] sm:$0xff]
    %v44 = vld [vmem:[#allocation2 + $0xa8] sm:$0xff]
    %v45 = vld [vmem:[#allocation2 + $0xb0] sm:$0xff]
    %v46 = vld [vmem:[#allocation2 + $0xb8] sm:$0xff]
    %v47 = vld [vmem:[#allocation2 + $0xc0] sm:$0xff]
    %v48 = vld [vmem:[#allocation2 + $0xc8] sm:$0xff]
    %v49 = vld [vmem:[#allocation2 + $0xd0] sm:$0xff]
    %v50 = vld [vmem:[#allocation2 + $0xd8] sm:$0xff]
    %v51 = vld [vmem:[#allocation2 + $0xe0] sm:$0xff]
    %v52 = vld [vmem:[#allocation2 + $0xe8] sm:$0xff]
    %v53 = vld [vmem:[#allocation2 + $0xf0] sm:$0xff]
    %v54 = vld [vmem:[#allocation2 + $0xf8] sm:$0xff]
    %v55 = vld [vmem:[#allocation2 + $0x100] sm:$0xff]
    %v56 = vld [vmem:[#allocation2 + $0x108] sm:$0xff]
    %v57 = vld [vmem:[#allocation2 + $0x110] sm:$0xff]
    %v58 = vld [vmem:[#allocation2 + $0x118] sm:$0xff]
    %v59 = vld [vmem:[#allocation2 + $0x120] sm:$0xff]
    %v60 = vld [vmem:[#allocation2 + $0x128] sm:$0xff]
    %v61 = vld [vmem:[#allocation2 + $0x130] sm:$0xff]
    %v62 = vld [vmem:[#allocation2 + $0x138] sm:$0xff]
    %v63 = vld [vmem:[#allocation2 + $0x140] sm:$0xff]
    %v64 = vld [vmem:[#allocation2 + $0x148] sm:$0xff]
    %v65 = vld [vmem:[#allocation2 + $0x150] sm:$0xff]
    %v66 = vld [vmem:[#allocation2 + $0x158] sm:$0xff]
    %v67 = vld [vmem:[#allocation2 + $0x160] sm:$0xff]
    %v68 = vld [vmem:[#allocation2 + $0x168] sm:$0xff]
    %v69 = vld [vmem:[#allocation2 + $0x170] sm:$0xff]
    %v70 = vld [vmem:[#allocation2 + $0x178] sm:$0xff]
    %v71 = vld [vmem:[#allocation2 + $0x180] sm:$0xff]
    %v72 = vld [vmem:[#allocation2 + $0x188] sm:$0xff]
    %v73 = vld [vmem:[#allocation2 + $0x190] sm:$0xff]
    %v74 = vld [vmem:[#allocation2 + $0x198] sm:$0xff]
    %v75 = vld [vmem:[#allocation2 + $0x1a0] sm:$0xff]
    %v76 = vld [vmem:[#allocation2 + $0x1a8] sm:$0xff]
    %v77 = vld [vmem:[#allocation2 + $0x1b0] sm:$0xff]
    %v78 = vld [vmem:[#allocation2 + $0x1b8] sm:$0xff]
    %v79 = vld [vmem:[#allocation2 + $0x1c0] sm:$0xff]
    %v80 = vld [vmem:[#allocation2 + $0x1c8] sm:$0xff]
    %v81 = vld [vmem:[#allocation2 + $0x1d0] sm:$0xff]
    %v82 = vld [vmem:[#allocation2 + $0x1d8] sm:$0xff]
    %v83 = vld [vmem:[#allocation2 + $0x1e0] sm:$0xff]
    %v84 = vld [vmem:[#allocation2 + $0x1e8] sm:$0xff]
    %v85 = vld [vmem:[#allocation2 + $0x1f0] sm:$0xff]
    %v86 = vld [vmem:[#allocation2 + $0x1f8] sm:$0xff]
    %v87 = vadd.f32 %v23, %v24
    %88 = vadd.xlane.f32.xlu0 %v87
    %v89 = vpop.xlane.xlu0 %88
    %v90 = vadd.f32 %v25, %v26
    %91 = vadd.xlane.f32.xlu0 %v90
    %v92 = vpop.xlane.xlu0 %91
    %v93 = vadd.f32 %v27, %v28
    %94 = vadd.xlane.f32.xlu0 %v93
    %v95 = vpop.xlane.xlu0 %94
    %v96 = vadd.f32 %v29, %v30
    %97 = vadd.xlane.f32.xlu0 %v96
    %v98 = vpop.xlane.xlu0 %97
    %v99 = vadd.f32 %v31, %v32
    %100 = vadd.xlane.f32.xlu0 %v99
    %v101 = vpop.xlane.xlu0 %100
    %v102 = vadd.f32 %v33, %v34
    %103 = vadd.xlane.f32.xlu0 %v102
    %v104 = vpop.xlane.xlu0 %103
    %v105 = vadd.f32 %v35, %v36
    %106 = vadd.xlane.f32.xlu0 %v105
    %v107 = vpop.xlane.xlu0 %106
    %v108 = vadd.f32 %v37, %v38
    %109 = vadd.xlane.f32.xlu0 %v108
    %v110 = vpop.xlane.xlu0 %109
    %v111 = vadd.f32 %v39, %v40
    %112 = vadd.xlane.f32.xlu0 %v111
    %v113 = vpop.xlane.xlu0 %112
    %v114 = vadd.f32 %v41, %v42
    %115 = vadd.xlane.f32.xlu0 %v114
    %v116 = vpop.xlane.xlu0 %115
    %v117 = vadd.f32 %v43, %v44
    %118 = vadd.xlane.f32.xlu0 %v117
    %v119 = vpop.xlane.xlu0 %118
    %v120 = vadd.f32 %v45, %v46
    %121 = vadd.xlane.f32.xlu0 %v120
    %v122 = vpop.xlane.xlu0 %121
    %v123 = vadd.f32 %v47, %v48
    %124 = vadd.xlane.f32.xlu0 %v123
    %v125 = vpop.xlane.xlu0 %124
    %v126 = vadd.f32 %v49, %v50
    %127 = vadd.xlane.f32.xlu0 %v126
    %v128 = vpop.xlane.xlu0 %127
    %v129 = vadd.f32 %v51, %v52
    %130 = vadd.xlane.f32.xlu0 %v129
    %v131 = vpop.xlane.xlu0 %130
    %v132 = vadd.f32 %v53, %v54
    %133 = vadd.xlane.f32.xlu0 %v132
    %v134 = vpop.xlane.xlu0 %133
    %v135 = vadd.f32 %v55, %v56
    %136 = vadd.xlane.f32.xlu0 %v135
    %v137 = vpop.xlane.xlu0 %136
    %v138 = vadd.f32 %v57, %v58
    %139 = vadd.xlane.f32.xlu0 %v138
    %v140 = vpop.xlane.xlu0 %139
    %v141 = vadd.f32 %v59, %v60
    %142 = vadd.xlane.f32.xlu0 %v141
    %v143 = vpop.xlane.xlu0 %142
    %v144 = vadd.f32 %v61, %v62
    %145 = vadd.xlane.f32.xlu0 %v144
    %v146 = vpop.xlane.xlu0 %145
    %v147 = vadd.f32 %v63, %v64
    %148 = vadd.xlane.f32.xlu0 %v147
    %v149 = vpop.xlane.xlu0 %148
    %v150 = vadd.f32 %v65, %v66
    %151 = vadd.xlane.f32.xlu0 %v150
    %v152 = vpop.xlane.xlu0 %151
    %v153 = vadd.f32 %v67, %v68
    %154 = vadd.xlane.f32.xlu0 %v153
    %v155 = vpop.xlane.xlu0 %154
    %v156 = vadd.f32 %v69, %v70
    %157 = vadd.xlane.f32.xlu0 %v156
    %v158 = vpop.xlane.xlu0 %157
    %v159 = vadd.f32 %v71, %v72
    %160 = vadd.xlane.f32.xlu0 %v159
    %v161 = vpop.xlane.xlu0 %160
    %v162 = vadd.f32 %v73, %v74
    %163 = vadd.xlane.f32.xlu0 %v162
    %v164 = vpop.xlane.xlu0 %163
    %v165 = vadd.f32 %v75, %v76
    %166 = vadd.xlane.f32.xlu0 %v165
    %v167 = vpop.xlane.xlu0 %166
    %v168 = vadd.f32 %v77, %v78
    %169 = vadd.xlane.f32.xlu0 %v168
    %v170 = vpop.xlane.xlu0 %169
    %v171 = vadd.f32 %v79, %v80
    %172 = vadd.xlane.f32.xlu0 %v171
    %v173 = vpop.xlane.xlu0 %172
    %v174 = vadd.f32 %v81, %v82
    %175 = vadd.xlane.f32.xlu0 %v174
    %v176 = vpop.xlane.xlu0 %175
    %v177 = vadd.f32 %v83, %v84
    %178 = vadd.xlane.f32.xlu0 %v177
    %v179 = vpop.xlane.xlu0 %178
    %v180 = vadd.f32 %v85, %v86
    %181 = vadd.xlane.f32.xlu0 %v180
    %v182 = vpop.xlane.xlu0 %181
    %v183 = vmul.f32 %v89, 0.00390625
    %v184 = vmul.f32 %v92, 0.00390625
    %v185 = vmul.f32 %v95, 0.00390625
    %v186 = vmul.f32 %v98, 0.00390625
    %v187 = vmul.f32 %v101, 0.00390625
    %v188 = vmul.f32 %v104, 0.00390625
    %v189 = vmul.f32 %v107, 0.00390625
    %v190 = vmul.f32 %v110, 0.00390625
    %v191 = vmul.f32 %v113, 0.00390625
    %v192 = vmul.f32 %v116, 0.00390625
    %v193 = vmul.f32 %v119, 0.00390625
    %v194 = vmul.f32 %v122, 0.00390625
    %v195 = vmul.f32 %v125, 0.00390625
    %v196 = vmul.f32 %v128, 0.00390625
    %v197 = vmul.f32 %v131, 0.00390625
    %v198 = vmul.f32 %v134, 0.00390625
    %v199 = vmul.f32 %v137, 0.00390625
    %v200 = vmul.f32 %v140, 0.00390625
    %v201 = vmul.f32 %v143, 0.00390625
    %v202 = vmul.f32 %v146, 0.00390625
    %v203 = vmul.f32 %v149, 0.00390625
    %v204 = vmul.f32 %v152, 0.00390625
    %v205 = vmul.f32 %v155, 0.00390625
    %v206 = vmul.f32 %v158, 0.00390625
    %v207 = vmul.f32 %v161, 0.00390625
    %v208 = vmul.f32 %v164, 0.00390625
    %v209 = vmul.f32 %v167, 0.00390625
    %v210 = vmul.f32 %v170, 0.00390625
    %v211 = vmul.f32 %v173, 0.00390625
    %v212 = vmul.f32 %v176, 0.00390625
    %v213 = vmul.f32 %v179, 0.00390625
    %v214 = vmul.f32 %v182, 0.00390625
    %v247 = vlaneseq
    %v248 = vand.u32 %v247, 127
    %v249 = vlaneseq
    %v250 = vshrl.u32 %v249, 7
    %v251 = vsub.s32 %v248, %v250
    %v252 = vrot.slane %v183, %v251
    %v253 = vadd.s32 %v248, 4294967288
    %v254 = vlaneseq
    %v255 = vshrl.u32 %v254, 7
    %v256 = vsub.s32 %v253, %v255
    %v257 = vrot.slane %v184, %v256
    %vm258 = vcmask 130112
    %v259 = vsel %vm258, %v257, %v252
    %v260 = vadd.s32 %v248, 4294967280
    %v261 = vlaneseq
    %v262 = vshrl.u32 %v261, 7
    %v263 = vsub.s32 %v260, %v262
    %v264 = vrot.slane %v185, %v263
    %vm265 = vcmask 195712
    %v266 = vsel %vm265, %v264, %v259
    %v267 = vadd.s32 %v248, 4294967272
    %v268 = vlaneseq
    %v269 = vshrl.u32 %v268, 7
    %v270 = vsub.s32 %v267, %v269
    %v271 = vrot.slane %v186, %v270
    %vm272 = vcmask 261312
    %v273 = vsel %vm272, %v271, %v266
    %v274 = vadd.s32 %v248, 4294967264
    %v275 = vlaneseq
    %v276 = vshrl.u32 %v275, 7
    %v277 = vsub.s32 %v274, %v276
    %v278 = vrot.slane %v187, %v277
    %vm279 = vcmask 326912
    %v280 = vsel %vm279, %v278, %v273
    %v281 = vadd.s32 %v248, 4294967256
    %v282 = vlaneseq
    %v283 = vshrl.u32 %v282, 7
    %v284 = vsub.s32 %v281, %v283
    %v285 = vrot.slane %v188, %v284
    %vm286 = vcmask 392512
    %v287 = vsel %vm286, %v285, %v280
    %v288 = vadd.s32 %v248, 4294967248
    %v289 = vlaneseq
    %v290 = vshrl.u32 %v289, 7
    %v291 = vsub.s32 %v288, %v290
    %v292 = vrot.slane %v189, %v291
    %vm293 = vcmask 458112
    %v294 = vsel %vm293, %v292, %v287
    %v295 = vadd.s32 %v248, 4294967240
    %v296 = vlaneseq
    %v297 = vshrl.u32 %v296, 7
    %v298 = vsub.s32 %v295, %v297
    %v299 = vrot.slane %v190, %v298
    %vm300 = vcmask 523712
    %v301 = vsel %vm300, %v299, %v294
    %v302 = vadd.s32 %v248, 4294967232
    %v303 = vlaneseq
    %v304 = vshrl.u32 %v303, 7
    %v305 = vsub.s32 %v302, %v304
    %v306 = vrot.slane %v191, %v305
    %vm307 = vcmask 589312
    %v308 = vsel %vm307, %v306, %v301
    %v309 = vadd.s32 %v248, 4294967224
    %v310 = vlaneseq
    %v311 = vshrl.u32 %v310, 7
    %v312 = vsub.s32 %v309, %v311
    %v313 = vrot.slane %v192, %v312
    %vm314 = vcmask 654912
    %v315 = vsel %vm314, %v313, %v308
    %v316 = vadd.s32 %v248, 4294967216
    %v317 = vlaneseq
    %v318 = vshrl.u32 %v317, 7
    %v319 = vsub.s32 %v316, %v318
    %v320 = vrot.slane %v193, %v319
    %vm321 = vcmask 720512
    %v322 = vsel %vm321, %v320, %v315
    %v323 = vadd.s32 %v248, 4294967208
    %v324 = vlaneseq
    %v325 = vshrl.u32 %v324, 7
    %v326 = vsub.s32 %v323, %v325
    %v327 = vrot.slane %v194, %v326
    %vm328 = vcmask 786112
    %v329 = vsel %vm328, %v327, %v322
    %v330 = vadd.s32 %v248, 4294967200
    %v331 = vlaneseq
    %v332 = vshrl.u32 %v331, 7
    %v333 = vsub.s32 %v330, %v332
    %v334 = vrot.slane %v195, %v333
    %vm335 = vcmask 851712
    %v336 = vsel %vm335, %v334, %v329
    %v337 = vadd.s32 %v248, 4294967192
    %v338 = vlaneseq
    %v339 = vshrl.u32 %v338, 7
    %v340 = vsub.s32 %v337, %v339
    %v341 = vrot.slane %v196, %v340
    %vm342 = vcmask 917312
    %v343 = vsel %vm342, %v341, %v336
    %v344 = vadd.s32 %v248, 4294967184
    %v345 = vlaneseq
    %v346 = vshrl.u32 %v345, 7
    %v347 = vsub.s32 %v344, %v346
    %v348 = vrot.slane %v197, %v347
    %vm349 = vcmask 982912
    %v350 = vsel %vm349, %v348, %v343
    %v351 = vadd.s32 %v248, 4294967176
    %v352 = vlaneseq
    %v353 = vshrl.u32 %v352, 7
    %v354 = vsub.s32 %v351, %v353
    %v355 = vrot.slane %v198, %v354
    %vm356 = vcmask 1048512
    %v357 = vsel %vm356, %v355, %v350
    %v358 = vlaneseq
    %v359 = vshrl.u32 %v358, 7
    %v360 = vsub.s32 %v248, %v359
    %v361 = vrot.slane %v199, %v360
    %v362 = vlaneseq
    %v363 = vshrl.u32 %v362, 7
    %v364 = vsub.s32 %v253, %v363
    %v365 = vrot.slane %v200, %v364
    %v366 = vsel %vm258, %v365, %v361
    %v367 = vlaneseq
    %v368 = vshrl.u32 %v367, 7
    %v369 = vsub.s32 %v260, %v368
    %v370 = vrot.slane %v201, %v369
    %v371 = vsel %vm265, %v370, %v366
    %v372 = vlaneseq
    %v373 = vshrl.u32 %v372, 7
    %v374 = vsub.s32 %v267, %v373
    %v375 = vrot.slane %v202, %v374
    %v376 = vsel %vm272, %v375, %v371
    %v377 = vlaneseq
    %v378 = vshrl.u32 %v377, 7
    %v379 = vsub.s32 %v274, %v378
    %v380 = vrot.slane %v203, %v379
    %v381 = vsel %vm279, %v380, %v376
    %v382 = vlaneseq
    %v383 = vshrl.u32 %v382, 7
    %v384 = vsub.s32 %v281, %v383
    %v385 = vrot.slane %v204, %v384
    %v386 = vsel %vm286, %v385, %v381
    %v387 = vlaneseq
    %v388 = vshrl.u32 %v387, 7
    %v389 = vsub.s32 %v288, %v388
    %v390 = vrot.slane %v205, %v389
    %v391 = vsel %vm293, %v390, %v386
    %v392 = vlaneseq
    %v393 = vshrl.u32 %v392, 7
    %v394 = vsub.s32 %v295, %v393
    %v395 = vrot.slane %v206, %v394
    %v396 = vsel %vm300, %v395, %v391
    %v397 = vlaneseq
    %v398 = vshrl.u32 %v397, 7
    %v399 = vsub.s32 %v302, %v398
    %v400 = vrot.slane %v207, %v399
    %v401 = vsel %vm307, %v400, %v396
    %v402 = vlaneseq
    %v403 = vshrl.u32 %v402, 7
    %v404 = vsub.s32 %v309, %v403
    %v405 = vrot.slane %v208, %v404
    %v406 = vsel %vm314, %v405, %v401
    %v407 = vlaneseq
    %v408 = vshrl.u32 %v407, 7
    %v409 = vsub.s32 %v316, %v408
    %v410 = vrot.slane %v209, %v409
    %v411 = vsel %vm321, %v410, %v406
    %v412 = vlaneseq
    %v413 = vshrl.u32 %v412, 7
    %v414 = vsub.s32 %v323, %v413
    %v415 = vrot.slane %v210, %v414
    %v416 = vsel %vm328, %v415, %v411
    %v417 = vlaneseq
    %v418 = vshrl.u32 %v417, 7
    %v419 = vsub.s32 %v330, %v418
    %v420 = vrot.slane %v211, %v419
    %v421 = vsel %vm335, %v420, %v416
    %v422 = vlaneseq
    %v423 = vshrl.u32 %v422, 7
    %v424 = vsub.s32 %v337, %v423
    %v425 = vrot.slane %v212, %v424
    %v426 = vsel %vm342, %v425, %v421
    %v427 = vlaneseq
    %v428 = vshrl.u32 %v427, 7
    %v429 = vsub.s32 %v344, %v428
    %v430 = vrot.slane %v213, %v429
    %v431 = vsel %vm349, %v430, %v426
    %v432 = vlaneseq
    %v433 = vshrl.u32 %v432, 7
    %v434 = vsub.s32 %v351, %v433
    %v435 = vrot.slane %v214, %v434
    %v436 = vsel %vm356, %v435, %v431
    %vm437 = vcmask 1041409
    %v438 = vsel %vm437, %v436, %v357
    %440 = vst [vmem:[#allocation5] sm:$0x3] %v438
    // Predicated region
    $region10: #{tpu_custom_call.1} parent=1 // pred_check
      _
    $region11: #{tpu_custom_call.1} parent=1 // pred_check_branch
      %442 = sbr.rel (0) target = $region13
    $region12: #{tpu_custom_call.1} parent=1 // pred_region
      %s444 = ssub.s32 32, 32
      %445 = vsyncadd [#allocation4], %s444
      %s447 = sshll.u32 [#allocation5], 4
      %s448 = int_to_ptr.vmem [resolvable:$true] %s447
      %450 = dma.vmem_to_hbm [thread:$0]  %s448, 32, %s1, [#allocation4]
    $region13: #{tpu_custom_call.1} parent=1 // pred_fallthru
      _
    // Predicated region
    $region14: #{tpu_custom_call.1} parent=1 // pred_check
      _
    $region15: #{tpu_custom_call.1} parent=1 // pred_check_branch
      %452 = sbr.rel (0) target = $region17
    $region16: #{tpu_custom_call.1} parent=1 // pred_region
      %453 = dma.done [#allocation4], 32
    $region17: #{tpu_custom_call.1} parent=1 // pred_fallthru
      _
    %454 = vsyncpa [#allocation3], 1
    %455 = vsyncpa [#allocation4], 1

</llo_original>
